<compile_context>
chip_gen: v7x
topology: tpu7x:2x2x1
jax: 0.10.0
libtpu: 0.0.40
codegen_flags: <defaults>
</compile_context>

<pallas_src>
import jax
import jax.numpy as jnp
from jax.experimental import pallas as pl
from jax.experimental.pallas import tpu as pltpu

B, C, H, W = 2, 4, 16, 16          # latent batch / channels / spatial
HW = H * W                         # 256 -> lane-dense
S, D = 8, 32                       # conditioning: tokens, context dim
F = 64                             # hidden width of the synthetic inner model


# --------------------------------------------------------------------------
# Fused kernel: inner model (both CFG branches, both batches) + CFG combine,
# single invocation, batch stacked along lanes.
# --------------------------------------------------------------------------
def _cfg_denoiser_kernel(s_ref,        # SMEM (1+2B,): [cond_scale, c_skip[0..B), c_out[0..B)]
                         x_ref,        # VMEM (C, B*HW)  batch stacked along lanes
                         ctx_ref,      # VMEM (F, 2B)    cols [uncond b0..b1 | cond b0..b1], b1 folded in
                         w_in_t_ref,   # VMEM (F, C)
                         w_out_t_ref,  # VMEM (C, F)
                         out_ref):     # VMEM (C, B*HW)
    x = x_ref[...]                                                   # (C, B*HW)

    # Shared 1x1-conv pre-activation for both CFG branches and both batches:
    # one MXU dot at full N = B*HW = 512 lanes.
    h_pre = jnp.dot(w_in_t_ref[...], x,
                    preferred_element_type=jnp.float32)              # (F, B*HW)

    ctx = ctx_ref[...]                                               # (F, 2B)
    w_out_t = w_out_t_ref[...]                                       # (C, F)
    scale = s_ref[0]

    for b in range(B):                       # static unroll, B = 2
        lo = b * HW
        hp = h_pre[:, lo:lo + HW]            # (F, HW) 128-lane-aligned static slice (vreg select)

        # CFG mix on the hidden activations (output head is affine => exact).
        # Accumulate form keeps only h_pre + acc live -> no vreg spill.
        acc = (1.0 - scale) * jnp.tanh(hp + ctx[:, b:b + 1])         # uncond branch
        acc = acc + scale * jnp.tanh(hp + ctx[:, B + b:B + b + 1])   # cond branch

        res = jnp.dot(w_out_t, acc,
                      preferred_element_type=jnp.float32)            # (C, HW)

        # k-diffusion sigma preconditioning; the branch-independent c_out*b2 term
        # is added wrapper-side (it cancels nowhere but is shared by both branches).
        c_skip = s_ref[1 + b]
        c_out = s_ref[1 + B + b]
        out_ref[:, lo:lo + HW] = (c_skip * x[:, lo:lo + HW]
                                  + c_out * res).astype(out_ref.dtype)


# --------------------------------------------------------------------------
# CFGDenoiser.forward
# --------------------------------------------------------------------------
def cfg_denoiser_forward(x, sigma, uncond, cond, cond_scale, params):
    # x: [B, C, H, W] (NCHW), sigma: [B], uncond/cond: [B, S, D], cond_scale: scalar
    w_in, w_ctx, b1, w_out, b2 = params

    # ---- wrapper-side layout plumbing & lane-sparse hoists (all tiny XLA ops) ----
    # Batch stacked along lanes: (C, B*HW); last dim 512 = 4x128 -> lane-dense stores.
    x_cf = jnp.transpose(x.reshape(B, C, HW), (1, 0, 2)).reshape(C, B * HW)

    # Pooled-context path hoisted out of the kernel (its in-kernel matmuls had N=2 lanes),
    # b1 folded in here.
    pooled_u = jnp.mean(uncond, axis=1)                      # (B, D)
    pooled_c = jnp.mean(cond, axis=1)                        # (B, D)
    ctx_u = pooled_u @ w_ctx + b1                            # (B, F)
    ctx_c = pooled_c @ w_ctx + b1                            # (B, F)
    ctx = jnp.concatenate([ctx_u, ctx_c], axis=0).T          # (F, 2B)
    ctx = ctx.astype(jnp.float32)

    # Sigma preconditioning scalars hoisted to one SMEM operand:
    # layout [cond_scale, c_skip(B), c_out(B)].
    sig = sigma.astype(jnp.float32)
    c_skip = 1.0 / (sig * sig + 1.0)                         # (B,)
    c_out = sig / jnp.sqrt(sig * sig + 1.0)                  # (B,)
    scale_arr = jnp.asarray(cond_scale, jnp.float32).reshape(1)
    smem_scalars = jnp.concatenate([scale_arr, c_skip, c_out])   # (1+2B,)

    # Pre-transposed weights for the channels-first layout (layout plumbing only).
    w_in_t = jnp.transpose(w_in).astype(jnp.float32)         # (F, C)
    w_out_t = jnp.transpose(w_out).astype(jnp.float32)       # (C, F)

    out_cf = pl.pallas_call(
        _cfg_denoiser_kernel,
        out_shape=jax.ShapeDtypeStruct((C, B * HW), jnp.float32),
        in_specs=[
            pl.BlockSpec(memory_space=pltpu.MemorySpace.SMEM),   # packed scalars
            pl.BlockSpec(memory_space=pltpu.MemorySpace.VMEM),   # x (channels-first, lane-stacked)
            pl.BlockSpec(memory_space=pltpu.MemorySpace.VMEM),   # ctx (b1 folded)
            pl.BlockSpec(memory_space=pltpu.MemorySpace.VMEM),   # w_in^T
            pl.BlockSpec(memory_space=pltpu.MemorySpace.VMEM),   # w_out^T
        ],
        out_specs=pl.BlockSpec(memory_space=pltpu.MemorySpace.VMEM),
    )(smem_scalars, x_cf, ctx, w_in_t, w_out_t)

    # (C, B*HW) -> (B, C, HW); add the branch-independent c_out*b2 term here (affine head),
    # fusing with the transpose XLA performs anyway.
    out = jnp.transpose(out_cf.reshape(C, B, HW), (1, 0, 2))     # (B, C, HW)
    out = out + c_out[:, None, None] * b2.reshape(1, C, 1)
    return out.reshape(B, C, H, W)


# --------------------------------------------------------------------------
# Pure-JAX reference (torch-style cat / chunk structure) for a correctness check.
# --------------------------------------------------------------------------
def _reference(x, sigma, uncond, cond, cond_scale, params):
    w_in, w_ctx, b1, w_out, b2 = params
    x_in = jnp.concatenate([x, x], axis=0)
    sigma_in = jnp.concatenate([sigma, sigma], axis=0)
    cond_in = jnp.concatenate([uncond, cond], axis=0)
    xf = jnp.transpose(x_in, (0, 2, 3, 1)).reshape(2 * B, HW, C)
    ctx = jnp.mean(cond_in, axis=1, keepdims=True) @ w_ctx           # [2B,1,F]
    h = jnp.tanh(jnp.einsum('bpc,cf->bpf', xf, w_in) + ctx + b1)
    res = jnp.einsum('bpf,fc->bpc', h, w_out) + b2
    sig = sigma_in[:, None, None]
    den = xf / (sig * sig + 1.0) + sig / jnp.sqrt(sig * sig + 1.0) * res
    u, c = den[:B], den[B:]
    out = u + (c - u) * cond_scale
    return jnp.transpose(out.reshape(B, H, W, C), (0, 3, 1, 2))


if __name__ == "__main__":
    key = jax.random.PRNGKey(0)
    kx, ks, ku, kc, k1, k2, k3, k4 = jax.random.split(key, 8)

    x = jax.random.normal(kx, (B, C, H, W), jnp.float32)
    sigma = jax.random.uniform(ks, (B,), jnp.float32, 0.1, 2.0)
    uncond = jax.random.normal(ku, (B, S, D), jnp.float32)
    cond = jax.random.normal(kc, (B, S, D), jnp.float32)
    cond_scale = 7.5

    # deterministic synthetic inner-model parameters (same layout as the reference)
    # TODO(synk): the real `inner_model` is an arbitrary user-supplied network; this
    # synthetic denoiser stands in for it.
    w_in = jax.random.normal(k1, (C, F), jnp.float32) * 0.2
    w_ctx = jax.random.normal(k2, (D, F), jnp.float32) * 0.1
    b1 = jnp.zeros((1, F), jnp.float32)
    w_out = jax.random.normal(k3, (F, C), jnp.float32) * 0.1
    b2 = jax.random.normal(k4, (1, C), jnp.float32) * 0.01
    params = (w_in, w_ctx, b1, w_out, b2)

    fwd = jax.jit(cfg_denoiser_forward)
    out = fwd(x, sigma, uncond, cond, cond_scale, params)
    out = jax.block_until_ready(out)

    ref = _reference(x, sigma, uncond, cond, cond_scale, params)
    assert out.shape == (B, C, H, W)
    assert jnp.allclose(out, ref, atol=1e-4, rtol=1e-4), "mismatch vs reference"

    print("KERNEL_OK")
</pallas_src>

<mosaic_0001>
module attributes {stable_mosaic.version = 11 : i64} {
  func.func @_cfg_denoiser_kernel(%arg0: memref<5xf32, #tpu.memory_space<smem>>, %arg1: memref<4x512xf32, #tpu.memory_space<vmem>>, %arg2: memref<64x4xf32, #tpu.memory_space<vmem>>, %arg3: memref<64x4xf32, #tpu.memory_space<vmem>>, %arg4: memref<4x64xf32, #tpu.memory_space<vmem>>, %arg5: memref<4x512xf32, #tpu.memory_space<vmem>>) attributes {dimension_semantics = [], scalar_prefetch = 0 : i64, scratch_operands = 0 : i64, tpu.core_type = #tpu.core_type<tc>} {
    %c0 = arith.constant 0 : index
    %c0_0 = arith.constant 0 : index
    %0 = vector.load %arg1[%c0, %c0_0] : memref<4x512xf32, #tpu.memory_space<vmem>>, vector<4x512xf32>
    %c0_1 = arith.constant 0 : index
    %c0_2 = arith.constant 0 : index
    %1 = vector.load %arg3[%c0_1, %c0_2] : memref<64x4xf32, #tpu.memory_space<vmem>>, vector<64x4xf32>
    %cst = arith.constant dense<0.000000e+00> : vector<64x512xf32>
    %2 = tpu.matmul %1, %0, %cst {dimension_numbers = #tpu.dot_dimension_numbers<[1], [0], [0], [1], [0, 0, 1, 1], [], []>} : vector<64x4xf32>, vector<4x512xf32>, vector<64x512xf32> -> vector<64x512xf32>
    %c0_3 = arith.constant 0 : index
    %c0_4 = arith.constant 0 : index
    %3 = vector.load %arg2[%c0_3, %c0_4] : memref<64x4xf32, #tpu.memory_space<vmem>>, vector<64x4xf32>
    %c0_5 = arith.constant 0 : index
    %c0_6 = arith.constant 0 : index
    %4 = vector.load %arg4[%c0_5, %c0_6] : memref<4x64xf32, #tpu.memory_space<vmem>>, vector<4x64xf32>
    %c0_7 = arith.constant 0 : index
    %5 = memref.load %arg0[%c0_7] : memref<5xf32, #tpu.memory_space<smem>>
    %6 = vector.extract_strided_slice %2 {offsets = [0, 0], sizes = [64, 256], strides = [1, 1]} : vector<64x512xf32> to vector<64x256xf32>
    %cst_8 = arith.constant 1.000000e+00 : f32
    %7 = arith.subf %cst_8, %5 : f32
    %8 = vector.extract_strided_slice %3 {offsets = [0, 0], sizes = [64, 1], strides = [1, 1]} : vector<64x4xf32> to vector<64x1xf32>
    %9 = vector.broadcast %8 : vector<64x1xf32> to vector<64x256xf32>
    %10 = arith.addf %6, %9 : vector<64x256xf32>
    %11 = math.tanh %10 : vector<64x256xf32>
    %12 = vector.broadcast %7 : f32 to vector<64x256xf32>
    %13 = arith.mulf %12, %11 : vector<64x256xf32>
    %14 = vector.extract_strided_slice %3 {offsets = [0, 2], sizes = [64, 1], strides = [1, 1]} : vector<64x4xf32> to vector<64x1xf32>
    %15 = vector.broadcast %14 : vector<64x1xf32> to vector<64x256xf32>
    %16 = arith.addf %6, %15 : vector<64x256xf32>
    %17 = math.tanh %16 : vector<64x256xf32>
    %18 = vector.broadcast %5 : f32 to vector<64x256xf32>
    %19 = arith.mulf %18, %17 : vector<64x256xf32>
    %20 = arith.addf %13, %19 : vector<64x256xf32>
    %cst_9 = arith.constant dense<0.000000e+00> : vector<4x256xf32>
    %21 = tpu.matmul %4, %20, %cst_9 {dimension_numbers = #tpu.dot_dimension_numbers<[1], [0], [0], [1], [0, 0, 1, 1], [], []>} : vector<4x64xf32>, vector<64x256xf32>, vector<4x256xf32> -> vector<4x256xf32>
    %c1 = arith.constant 1 : index
    %22 = memref.load %arg0[%c1] : memref<5xf32, #tpu.memory_space<smem>>
    %c3 = arith.constant 3 : index
    %23 = memref.load %arg0[%c3] : memref<5xf32, #tpu.memory_space<smem>>
    %24 = vector.extract_strided_slice %0 {offsets = [0, 0], sizes = [4, 256], strides = [1, 1]} : vector<4x512xf32> to vector<4x256xf32>
    %25 = vector.broadcast %22 : f32 to vector<4x256xf32>
    %26 = arith.mulf %25, %24 : vector<4x256xf32>
    %27 = vector.broadcast %23 : f32 to vector<4x256xf32>
    %28 = arith.mulf %27, %21 : vector<4x256xf32>
    %29 = arith.addf %26, %28 : vector<4x256xf32>
    %c0_10 = arith.constant 0 : index
    %c0_11 = arith.constant 0 : index
    %30 = vector.load %arg5[%c0_10, %c0_11] : memref<4x512xf32, #tpu.memory_space<vmem>>, vector<4x256xf32>
    tpu.vector_store %arg5[%c0_10, %c0_11], %29 {strides = array<i32>} : memref<4x512xf32, #tpu.memory_space<vmem>>, vector<4x256xf32>,
    %31 = vector.extract_strided_slice %2 {offsets = [0, 256], sizes = [64, 256], strides = [1, 1]} : vector<64x512xf32> to vector<64x256xf32>
    %cst_12 = arith.constant 1.000000e+00 : f32
    %32 = arith.subf %cst_12, %5 : f32
    %33 = vector.extract_strided_slice %3 {offsets = [0, 1], sizes = [64, 1], strides = [1, 1]} : vector<64x4xf32> to vector<64x1xf32>
    %34 = vector.broadcast %33 : vector<64x1xf32> to vector<64x256xf32>
    %35 = arith.addf %31, %34 : vector<64x256xf32>
    %36 = math.tanh %35 : vector<64x256xf32>
    %37 = vector.broadcast %32 : f32 to vector<64x256xf32>
    %38 = arith.mulf %37, %36 : vector<64x256xf32>
    %39 = vector.extract_strided_slice %3 {offsets = [0, 3], sizes = [64, 1], strides = [1, 1]} : vector<64x4xf32> to vector<64x1xf32>
    %40 = vector.broadcast %39 : vector<64x1xf32> to vector<64x256xf32>
    %41 = arith.addf %31, %40 : vector<64x256xf32>
    %42 = math.tanh %41 : vector<64x256xf32>
    %43 = vector.broadcast %5 : f32 to vector<64x256xf32>
    %44 = arith.mulf %43, %42 : vector<64x256xf32>
    %45 = arith.addf %38, %44 : vector<64x256xf32>
    %cst_13 = arith.constant dense<0.000000e+00> : vector<4x256xf32>
    %46 = tpu.matmul %4, %45, %cst_13 {dimension_numbers = #tpu.dot_dimension_numbers<[1], [0], [0], [1], [0, 0, 1, 1], [], []>} : vector<4x64xf32>, vector<64x256xf32>, vector<4x256xf32> -> vector<4x256xf32>
    %c2 = arith.constant 2 : index
    %47 = memref.load %arg0[%c2] : memref<5xf32, #tpu.memory_space<smem>>
    %c4 = arith.constant 4 : index
    %48 = memref.load %arg0[%c4] : memref<5xf32, #tpu.memory_space<smem>>
    %49 = vector.extract_strided_slice %0 {offsets = [0, 256], sizes = [4, 256], strides = [1, 1]} : vector<4x512xf32> to vector<4x256xf32>
    %50 = vector.broadcast %47 : f32 to vector<4x256xf32>
    %51 = arith.mulf %50, %49 : vector<4x256xf32>
    %52 = vector.broadcast %48 : f32 to vector<4x256xf32>
    %53 = arith.mulf %52, %46 : vector<4x256xf32>
    %54 = arith.addf %51, %53 : vector<4x256xf32>
    %c0_14 = arith.constant 0 : index
    %c256 = arith.constant 256 : index
    %55 = vector.load %arg5[%c0_14, %c256] : memref<4x512xf32, #tpu.memory_space<vmem>>, vector<4x256xf32>
    tpu.vector_store %arg5[%c0_14, %c256], %54 {strides = array<i32>} : memref<4x512xf32, #tpu.memory_space<vmem>>, vector<4x256xf32>,
    return
  }
}

</mosaic_0001>

<llo_original>
// kernel: cfg_denoiser_forward.1
$region0: #{cfg_denoiser_forward.1}
  #allocation0 [shape = 'u32[]', space=smem, size = 0x4, offset = 0x4, fixed_abs, tag = 'smem constant byte address 0x4 - core index']
  #allocation1 [shape = 'u32[144,128]{1,0:T(1,128)}', space=vmem, size = 0x12000, scoped, tag = 'internal scratch']
  %s0 = inlined_call_operand.vmem [shape: f32[5], index: 0, kind: input, shape index: {}]
  %s1 = inlined_call_operand.vmem [shape: f32[4,512], index: 1, kind: input, shape index: {}]
  %s2 = inlined_call_operand.vmem [shape: f32[64,4], index: 2, kind: input, shape index: {}]
  %s3 = inlined_call_operand.vmem [shape: f32[64,4], index: 3, kind: input, shape index: {}]
  %s4 = inlined_call_operand.vmem [shape: f32[4,64], index: 4, kind: input, shape index: {}]
  %s5 = inlined_call_operand.vmem [shape: f32[4,512], index: 5, kind: output, shape index: {}]
  %s6 = sld [smem:[#allocation0]]
  $region34: #{cfg_denoiser_forward.1} parent=0
    _
  %s8 = ssub.s32 1, %s6
  %s9 = scalar_select 0, %s8, %s6
  $region1: #{cfg_denoiser_forward.1} parent=0
    #allocation2 [shape = 'u8[512]{0}', space=smem, size = 0x200, scoped, tag = 'input window, operand 0, single buffered']
    #allocation3 [shape = 's32[1]{0}', space=sflag, size = 0x4, scoped, tag = 'scoped memory for cfg_denoiser_forward.1']
    %10 = vsyncpa [#allocation3], 0
    // Predicated region
    $region2: #{cfg_denoiser_forward.1} parent=1 // pred_check
      _
    $region3: #{cfg_denoiser_forward.1} parent=1 // pred_check_branch
      %12 = sbr.rel (0) target = $region5
    $region4: #{cfg_denoiser_forward.1} parent=1 // pred_region
      %s14 = ssub.s32 16, 16
      %15 = vsyncadd [#allocation3], %s14
      %s17 = sshll.u32 %s0, 4
      %s18 = int_to_ptr.vmem [resolvable:$true] %s17
      %20 = dma.vmem_to_smem %s18, 16, [#allocation2], [#allocation3]
    $region5: #{cfg_denoiser_forward.1} parent=1 // pred_fallthru
      _
    // Predicated region
    $region6: #{cfg_denoiser_forward.1} parent=1 // pred_check
      _
    $region7: #{cfg_denoiser_forward.1} parent=1 // pred_check_branch
      %22 = sbr.rel (0) target = $region9
    $region8: #{cfg_denoiser_forward.1} parent=1 // pred_region
      _
    $region9: #{cfg_denoiser_forward.1} parent=1 // pred_fallthru
      _
    // Predicated region
    $region10: #{cfg_denoiser_forward.1} parent=1 // pred_check
      _
    $region11: #{cfg_denoiser_forward.1} parent=1 // pred_check_branch
      %24 = sbr.rel (0) target = $region13
    $region12: #{cfg_denoiser_forward.1} parent=1 // pred_region
      _
    $region13: #{cfg_denoiser_forward.1} parent=1 // pred_fallthru
      _
    // Predicated region
    $region14: #{cfg_denoiser_forward.1} parent=1 // pred_check
      _
    $region15: #{cfg_denoiser_forward.1} parent=1 // pred_check_branch
      %26 = sbr.rel (0) target = $region17
    $region16: #{cfg_denoiser_forward.1} parent=1 // pred_region
      _
    $region17: #{cfg_denoiser_forward.1} parent=1 // pred_fallthru
      _
    // Predicated region
    $region18: #{cfg_denoiser_forward.1} parent=1 // pred_check
      _
    $region19: #{cfg_denoiser_forward.1} parent=1 // pred_check_branch
      %28 = sbr.rel (0) target = $region21
    $region20: #{cfg_denoiser_forward.1} parent=1 // pred_region
      _
    $region21: #{cfg_denoiser_forward.1} parent=1 // pred_fallthru
      _
    // Predicated region
    $region22: #{cfg_denoiser_forward.1} parent=1 // pred_check
      _
    $region23: #{cfg_denoiser_forward.1} parent=1 // pred_check_branch
      %30 = sbr.rel (0) target = $region25
    $region24: #{cfg_denoiser_forward.1} parent=1 // pred_region
      %31 = dma.done [#allocation3], 16
    $region25: #{cfg_denoiser_forward.1} parent=1 // pred_fallthru
      _
    %32 = sfence
    %v33 = vld [vmem:[%s1] sm:$0xff]
    %v34 = vld [vmem:[%s1 + $0x8] sm:$0xff]
    %v35 = vld [vmem:[%s3] sm:$0xff]
    %v36 = vld [vmem:[%s3 + $0x8] sm:$0xff]
    %v37 = vld [vmem:[%s3 + $0x10] sm:$0xff]
    %v38 = vld [vmem:[%s3 + $0x18] sm:$0xff]
    %v39 = vld [vmem:[%s3 + $0x20] sm:$0xff]
    %v40 = vld [vmem:[%s3 + $0x28] sm:$0xff]
    %v41 = vld [vmem:[%s3 + $0x30] sm:$0xff]
    %v42 = vld [vmem:[%s3 + $0x38] sm:$0xff]
    %v45 = vcombine.high %v33, %v33
    %v46 = vcombine.high %v34, %v34
    %vm47 = vcmask 31744
    %v49 = vsel %vm47, %v35, 0
    %v52 = vsel %vm47, %v36, 0
    %v55 = vsel %vm47, %v37, 0
    %v58 = vsel %vm47, %v38, 0
    %v61 = vsel %vm47, %v39, 0
    %v64 = vsel %vm47, %v40, 0
    %v67 = vsel %vm47, %v41, 0
    %v70 = vsel %vm47, %v42, 0
    %vm72 = vcmask 1043456
    %v73 = vsel %vm72, %v33, 0
    %v75 = vsel %vm72, %v45, 0
    %v77 = vsel %vm72, %v34, 0
    %v79 = vsel %vm72, %v46, 0
    %81 = vmatprep.subr.mxu0 %v75
    %82 = vmatpush1.msra.mxu0 %v73
    %83 = vmatprep.subr.mxu0 0.0
    %84 = vmatpush1.msra.mxu0 0.0
    %85 = vmatprep.subr.mxu0 0.0
    %86 = vmatpush1.msra.mxu0 0.0
    %87 = vmatprep.subr.mxu0 0.0
    %88 = vmatpush1.msra.mxu0 0.0
    %89 = vmatprep.subr.mxu0 0.0
    %90 = vmatpush1.msra.mxu0 0.0
    %91 = vmatprep.subr.mxu0 0.0
    %92 = vmatpush1.msra.mxu0 0.0
    %93 = vmatprep.subr.mxu0 0.0
    %94 = vmatpush1.msra.mxu0 0.0
    %95 = vmatprep.subr.mxu0 0.0
    %96 = vmatpush1.msra.mxu0 0.0
    %97 = vmatprep.subr.mxu0 0.0
    %98 = vmatpush1.msra.mxu0 0.0
    %99 = vmatprep.subr.mxu0 0.0
    %100 = vmatpush1.msra.mxu0 0.0
    %101 = vmatprep.subr.mxu0 0.0
    %102 = vmatpush1.msra.mxu0 0.0
    %103 = vmatprep.subr.mxu0 0.0
    %104 = vmatpush1.msra.mxu0 0.0
    %105 = vmatprep.subr.mxu0 0.0
    %106 = vmatpush1.msra.mxu0 0.0
    %107 = vmatprep.subr.mxu0 0.0
    %108 = vmatpush1.msra.mxu0 0.0
    %109 = vmatprep.subr.mxu0 0.0
    %110 = vmatpush1.msra.mxu0 0.0
    %111 = vmatprep.subr.mxu0 0.0
    %112 = vmatpush1.msra.mxu0 0.0
    %113 = vmatprep.subr.mxu0 0.0
    %114 = vmatpush1.msra.mxu0 0.0
    %115 = vmatprep.subr.mxu0 0.0
    %116 = vmatpush1.msra.mxu0 0.0
    %117 = vmatprep.subr.mxu0 0.0
    %118 = vmatpush1.msra.mxu0 0.0
    %119 = vmatprep.subr.mxu0 0.0
    %120 = vmatpush1.msra.mxu0 0.0
    %121 = vmatprep.subr.mxu0 0.0
    %122 = vmatpush1.msra.mxu0 0.0
    %123 = vmatprep.subr.mxu0 0.0
    %124 = vmatpush1.msra.mxu0 0.0
    %125 = vmatprep.subr.mxu0 0.0
    %126 = vmatpush1.msra.mxu0 0.0
    %127 = vmatprep.subr.mxu0 0.0
    %128 = vmatpush1.msra.mxu0 0.0
    %129 = vmatprep.subr.mxu0 0.0
    %130 = vmatpush1.msra.mxu0 0.0
    %131 = vmatprep.subr.mxu0 0.0
    %132 = vmatpush1.msra.mxu0 0.0
    %133 = vmatprep.subr.mxu0 0.0
    %134 = vmatpush1.msra.mxu0 0.0
    %135 = vmatprep.subr.mxu0 0.0
    %136 = vmatpush1.msra.mxu0 0.0
    %137 = vmatprep.subr.mxu0 0.0
    %138 = vmatpush1.msra.mxu0 0.0
    %139 = vmatprep.subr.mxu0 0.0
    %140 = vmatpush1.msra.mxu0 0.0
    %141 = vmatprep.subr.mxu0 0.0
    %142 = vmatpush1.msra.mxu0 0.0
    %143 = vmatprep.subr.mxu0 0.0
    %144 = vmatpush1.msra.mxu0 0.0
    %145 = vmatprep.mubr.f32.mxu0 0.0
    %146 = vmatmul.mubr.f32.gmra.mrb[0].mxu0 %v49
    %v147 = vpop.f32.mrb[0].mxu0
    %v148 = vadd.f32 0.0, %v147
    %v149 = vpop.f32.mrb[0].mxu0
    %v150 = vadd.f32 0.0, %v149
    %151 = vmatprep.mubr.f32.mxu0 0.0
    %152 = vmatmul.mubr.f32.gmra.mrb[0].mxu0 %v52
    %v153 = vpop.f32.mrb[0].mxu0
    %v154 = vadd.f32 0.0, %v153
    %v155 = vpop.f32.mrb[0].mxu0
    %v156 = vadd.f32 0.0, %v155
    %157 = vmatprep.mubr.f32.mxu0 0.0
    %158 = vmatmul.mubr.f32.gmra.mrb[0].mxu0 %v55
    %v159 = vpop.f32.mrb[0].mxu0
    %v160 = vadd.f32 0.0, %v159
    %v161 = vpop.f32.mrb[0].mxu0
    %v162 = vadd.f32 0.0, %v161
    %163 = vmatprep.mubr.f32.mxu0 0.0
    %164 = vmatmul.mubr.f32.gmra.mrb[0].mxu0 %v58
    %v165 = vpop.f32.mrb[0].mxu0
    %v166 = vadd.f32 0.0, %v165
    %v167 = vpop.f32.mrb[0].mxu0
    %v168 = vadd.f32 0.0, %v167
    %169 = vmatprep.mubr.f32.mxu0 0.0
    %170 = vmatmul.mubr.f32.gmra.mrb[0].mxu0 %v61
    %v171 = vpop.f32.mrb[0].mxu0
    %v172 = vadd.f32 0.0, %v171
    %v173 = vpop.f32.mrb[0].mxu0
    %v174 = vadd.f32 0.0, %v173
    %175 = vmatprep.mubr.f32.mxu0 0.0
    %176 = vmatmul.mubr.f32.gmra.mrb[0].mxu0 %v64
    %v177 = vpop.f32.mrb[0].mxu0
    %v178 = vadd.f32 0.0, %v177
    %v179 = vpop.f32.mrb[0].mxu0
    %v180 = vadd.f32 0.0, %v179
    %181 = vmatprep.mubr.f32.mxu0 0.0
    %182 = vmatmul.mubr.f32.gmra.mrb[0].mxu0 %v67
    %v183 = vpop.f32.mrb[0].mxu0
    %v184 = vadd.f32 0.0, %v183
    %v185 = vpop.f32.mrb[0].mxu0
    %v186 = vadd.f32 0.0, %v185
    %187 = vmatprep.mubr.f32.mxu0 0.0
    %188 = vmatmul.mubr.f32.gmra.mrb[0].mxu0 %v70
    %v189 = vpop.f32.mrb[0].mxu0
    %v190 = vadd.f32 0.0, %v189
    %v191 = vpop.f32.mrb[0].mxu0
    %v192 = vadd.f32 0.0, %v191
    %193 = vdwg.mxu0
    %194 = vmatprep.subr.mxu0 %v79
    %195 = vmatpush1.msra.mxu0 %v77
    %196 = vmatprep.subr.mxu0 0.0
    %197 = vmatpush1.msra.mxu0 0.0
    %198 = vmatprep.subr.mxu0 0.0
    %199 = vmatpush1.msra.mxu0 0.0
    %200 = vmatprep.subr.mxu0 0.0
    %201 = vmatpush1.msra.mxu0 0.0
    %202 = vmatprep.subr.mxu0 0.0
    %203 = vmatpush1.msra.mxu0 0.0
    %204 = vmatprep.subr.mxu0 0.0
    %205 = vmatpush1.msra.mxu0 0.0
    %206 = vmatprep.subr.mxu0 0.0
    %207 = vmatpush1.msra.mxu0 0.0
    %208 = vmatprep.subr.mxu0 0.0
    %209 = vmatpush1.msra.mxu0 0.0
    %210 = vmatprep.subr.mxu0 0.0
    %211 = vmatpush1.msra.mxu0 0.0
    %212 = vmatprep.subr.mxu0 0.0
    %213 = vmatpush1.msra.mxu0 0.0
    %214 = vmatprep.subr.mxu0 0.0
    %215 = vmatpush1.msra.mxu0 0.0
    %216 = vmatprep.subr.mxu0 0.0
    %217 = vmatpush1.msra.mxu0 0.0
    %218 = vmatprep.subr.mxu0 0.0
    %219 = vmatpush1.msra.mxu0 0.0
    %220 = vmatprep.subr.mxu0 0.0
    %221 = vmatpush1.msra.mxu0 0.0
    %222 = vmatprep.subr.mxu0 0.0
    %223 = vmatpush1.msra.mxu0 0.0
    %224 = vmatprep.subr.mxu0 0.0
    %225 = vmatpush1.msra.mxu0 0.0
    %226 = vmatprep.subr.mxu0 0.0
    %227 = vmatpush1.msra.mxu0 0.0
    %228 = vmatprep.subr.mxu0 0.0
    %229 = vmatpush1.msra.mxu0 0.0
    %230 = vmatprep.subr.mxu0 0.0
    %231 = vmatpush1.msra.mxu0 0.0
    %232 = vmatprep.subr.mxu0 0.0
    %233 = vmatpush1.msra.mxu0 0.0
    %234 = vmatprep.subr.mxu0 0.0
    %235 = vmatpush1.msra.mxu0 0.0
    %236 = vmatprep.subr.mxu0 0.0
    %237 = vmatpush1.msra.mxu0 0.0
    %238 = vmatprep.subr.mxu0 0.0
    %239 = vmatpush1.msra.mxu0 0.0
    %240 = vmatprep.subr.mxu0 0.0
    %241 = vmatpush1.msra.mxu0 0.0
    %242 = vmatprep.subr.mxu0 0.0
    %243 = vmatpush1.msra.mxu0 0.0
    %244 = vmatprep.subr.mxu0 0.0
    %245 = vmatpush1.msra.mxu0 0.0
    %246 = vmatprep.subr.mxu0 0.0
    %247 = vmatpush1.msra.mxu0 0.0
    %248 = vmatprep.subr.mxu0 0.0
    %249 = vmatpush1.msra.mxu0 0.0
    %250 = vmatprep.subr.mxu0 0.0
    %251 = vmatpush1.msra.mxu0 0.0
    %252 = vmatprep.subr.mxu0 0.0
    %253 = vmatpush1.msra.mxu0 0.0
    %254 = vmatprep.subr.mxu0 0.0
    %255 = vmatpush1.msra.mxu0 0.0
    %256 = vmatprep.subr.mxu0 0.0
    %257 = vmatpush1.msra.mxu0 0.0
    %258 = vmatprep.mubr.f32.mxu0 0.0
    %259 = vmatmul.mubr.f32.gmra.mrb[0].mxu0 %v49
    %v260 = vpop.f32.mrb[0].mxu0
    %v261 = vadd.f32 0.0, %v260
    %v262 = vpop.f32.mrb[0].mxu0
    %v263 = vadd.f32 0.0, %v262
    %264 = vmatprep.mubr.f32.mxu0 0.0
    %265 = vmatmul.mubr.f32.gmra.mrb[0].mxu0 %v52
    %v266 = vpop.f32.mrb[0].mxu0
    %v267 = vadd.f32 0.0, %v266
    %v268 = vpop.f32.mrb[0].mxu0
    %v269 = vadd.f32 0.0, %v268
    %270 = vmatprep.mubr.f32.mxu0 0.0
    %271 = vmatmul.mubr.f32.gmra.mrb[0].mxu0 %v55
    %v272 = vpop.f32.mrb[0].mxu0
    %v273 = vadd.f32 0.0, %v272
    %v274 = vpop.f32.mrb[0].mxu0
    %v275 = vadd.f32 0.0, %v274
    %276 = vmatprep.mubr.f32.mxu0 0.0
    %277 = vmatmul.mubr.f32.gmra.mrb[0].mxu0 %v58
    %v278 = vpop.f32.mrb[0].mxu0
    %v279 = vadd.f32 0.0, %v278
    %v280 = vpop.f32.mrb[0].mxu0
    %v281 = vadd.f32 0.0, %v280
    %282 = vmatprep.mubr.f32.mxu0 0.0
    %283 = vmatmul.mubr.f32.gmra.mrb[0].mxu0 %v61
    %v284 = vpop.f32.mrb[0].mxu0
    %v285 = vadd.f32 0.0, %v284
    %v286 = vpop.f32.mrb[0].mxu0
    %v287 = vadd.f32 0.0, %v286
    %288 = vmatprep.mubr.f32.mxu0 0.0
    %289 = vmatmul.mubr.f32.gmra.mrb[0].mxu0 %v64
    %v290 = vpop.f32.mrb[0].mxu0
    %v291 = vadd.f32 0.0, %v290
    %v292 = vpop.f32.mrb[0].mxu0
    %v293 = vadd.f32 0.0, %v292
    %294 = vmatprep.mubr.f32.mxu0 0.0
    %295 = vmatmul.mubr.f32.gmra.mrb[0].mxu0 %v67
    %v296 = vpop.f32.mrb[0].mxu0
    %v297 = vadd.f32 0.0, %v296
    %v298 = vpop.f32.mrb[0].mxu0
    %v299 = vadd.f32 0.0, %v298
    %300 = vmatprep.mubr.f32.mxu0 0.0
    %301 = vmatmul.mubr.f32.gmra.mrb[0].mxu0 %v70
    %v302 = vpop.f32.mrb[0].mxu0
    %v303 = vadd.f32 0.0, %v302
    %v304 = vpop.f32.mrb[0].mxu0
    %v305 = vadd.f32 0.0, %v304
    %306 = vdwg.mxu0
    %v307 = vld [vmem:[%s2] sm:$0xff]
    %v308 = vld [vmem:[%s2 + $0x8] sm:$0xff]
    %v309 = vld [vmem:[%s2 + $0x10] sm:$0xff]
    %v310 = vld [vmem:[%s2 + $0x18] sm:$0xff]
    %v311 = vld [vmem:[%s2 + $0x20] sm:$0xff]
    %v312 = vld [vmem:[%s2 + $0x28] sm:$0xff]
    %v313 = vld [vmem:[%s2 + $0x30] sm:$0xff]
    %v314 = vld [vmem:[%s2 + $0x38] sm:$0xff]
    %v315 = vld [vmem:[%s4] sm:$0xf]
    %s316 = sld [smem:[#allocation2]]
    %s317 = ssub.f32 1.0, %s316
    %319 = vset.pattern.permute.xlu0 0
    %320 = vperm.xlu0 %319, %v307
    %v321 = vpop.permute.xlu0 %320
    %324 = vset.pattern.permute.xlu0 0
    %325 = vperm.xlu0 %324, %v308
    %v326 = vpop.permute.xlu0 %325
    %329 = vset.pattern.permute.xlu0 0
    %330 = vperm.xlu0 %329, %v309
    %v331 = vpop.permute.xlu0 %330
    %334 = vset.pattern.permute.xlu0 0
    %335 = vperm.xlu0 %334, %v310
    %v336 = vpop.permute.xlu0 %335
    %339 = vset.pattern.permute.xlu0 0
    %340 = vperm.xlu0 %339, %v311
    %v341 = vpop.permute.xlu0 %340
    %344 = vset.pattern.permute.xlu0 0
    %345 = vperm.xlu0 %344, %v312
    %v346 = vpop.permute.xlu0 %345
    %349 = vset.pattern.permute.xlu0 0
    %350 = vperm.xlu0 %349, %v313
    %v351 = vpop.permute.xlu0 %350
    %354 = vset.pattern.permute.xlu0 0
    %355 = vperm.xlu0 %354, %v314
    %v356 = vpop.permute.xlu0 %355
    %v358 = vadd.f32 %v148, %v321
    %v359 = vadd.f32 %v150, %v321
    %v360 = vadd.f32 %v154, %v326
    %v361 = vadd.f32 %v156, %v326
    %v362 = vadd.f32 %v160, %v331
    %v363 = vadd.f32 %v162, %v331
    %v364 = vadd.f32 %v166, %v336
    %v365 = vadd.f32 %v168, %v336
    %v366 = vadd.f32 %v172, %v341
    %v367 = vadd.f32 %v174, %v341
    %v368 = vadd.f32 %v178, %v346
    %v369 = vadd.f32 %v180, %v346
    %v370 = vadd.f32 %v184, %v351
    %v371 = vadd.f32 %v186, %v351
    %v372 = vadd.f32 %v190, %v356
    %v373 = vadd.f32 %v192, %v356
    %v374 = vtanh.pop %v358
    %v375 = vtanh.pop %v359
    %v376 = vtanh.pop %v360
    %v377 = vtanh.pop %v361
    %v378 = vtanh.pop %v362
    %v379 = vtanh.pop %v363
    %v380 = vtanh.pop %v364
    %v381 = vtanh.pop %v365
    %v382 = vtanh.pop %v366
    %v383 = vtanh.pop %v367
    %v384 = vtanh.pop %v368
    %v385 = vtanh.pop %v369
    %v386 = vtanh.pop %v370
    %v387 = vtanh.pop %v371
    %v388 = vtanh.pop %v372
    %v389 = vtanh.pop %v373
    %v390 = vstv %s317
    %v391 = vmul.f32 %v390, %v374
    %v392 = vmul.f32 %v390, %v375
    %v393 = vmul.f32 %v390, %v376
    %v394 = vmul.f32 %v390, %v377
    %v395 = vmul.f32 %v390, %v378
    %v396 = vmul.f32 %v390, %v379
    %v397 = vmul.f32 %v390, %v380
    %v398 = vmul.f32 %v390, %v381
    %v399 = vmul.f32 %v390, %v382
    %v400 = vmul.f32 %v390, %v383
    %v401 = vmul.f32 %v390, %v384
    %v402 = vmul.f32 %v390, %v385
    %v403 = vmul.f32 %v390, %v386
    %v404 = vmul.f32 %v390, %v387
    %v405 = vmul.f32 %v390, %v388
    %v406 = vmul.f32 %v390, %v389
    %407 = vset.pattern.permute.xlu0 2
    %408 = vperm.xlu0 %407, %v307
    %v409 = vpop.permute.xlu0 %408
    %411 = vset.pattern.permute.xlu0 2
    %412 = vperm.xlu0 %411, %v308
    %v413 = vpop.permute.xlu0 %412
    %415 = vset.pattern.permute.xlu0 2
    %416 = vperm.xlu0 %415, %v309
    %v417 = vpop.permute.xlu0 %416
    %419 = vset.pattern.permute.xlu0 2
    %420 = vperm.xlu0 %419, %v310
    %v421 = vpop.permute.xlu0 %420
    %423 = vset.pattern.permute.xlu0 2
    %424 = vperm.xlu0 %423, %v311
    %v425 = vpop.permute.xlu0 %424
    %427 = vset.pattern.permute.xlu0 2
    %428 = vperm.xlu0 %427, %v312
    %v429 = vpop.permute.xlu0 %428
    %431 = vset.pattern.permute.xlu0 2
    %432 = vperm.xlu0 %431, %v313
    %v433 = vpop.permute.xlu0 %432
    %435 = vset.pattern.permute.xlu0 2
    %436 = vperm.xlu0 %435, %v314
    %v437 = vpop.permute.xlu0 %436
    %v439 = vadd.f32 %v148, %v409
    %v440 = vadd.f32 %v150, %v409
    %v441 = vadd.f32 %v154, %v413
    %v442 = vadd.f32 %v156, %v413
    %v443 = vadd.f32 %v160, %v417
    %v444 = vadd.f32 %v162, %v417
    %v445 = vadd.f32 %v166, %v421
    %v446 = vadd.f32 %v168, %v421
    %v447 = vadd.f32 %v172, %v425
    %v448 = vadd.f32 %v174, %v425
    %v449 = vadd.f32 %v178, %v429
    %v450 = vadd.f32 %v180, %v429
    %v451 = vadd.f32 %v184, %v433
    %v452 = vadd.f32 %v186, %v433
    %v453 = vadd.f32 %v190, %v437
    %v454 = vadd.f32 %v192, %v437
    %v455 = vtanh.pop %v439
    %v456 = vtanh.pop %v440
    %v457 = vtanh.pop %v441
    %v458 = vtanh.pop %v442
    %v459 = vtanh.pop %v443
    %v460 = vtanh.pop %v444
    %v461 = vtanh.pop %v445
    %v462 = vtanh.pop %v446
    %v463 = vtanh.pop %v447
    %v464 = vtanh.pop %v448
    %v465 = vtanh.pop %v449
    %v466 = vtanh.pop %v450
    %v467 = vtanh.pop %v451
    %v468 = vtanh.pop %v452
    %v469 = vtanh.pop %v453
    %v470 = vtanh.pop %v454
    %v471 = vstv %s316
    %v472 = vmul.f32 %v471, %v455
    %v473 = vmul.f32 %v471, %v456
    %v474 = vmul.f32 %v471, %v457
    %v475 = vmul.f32 %v471, %v458
    %v476 = vmul.f32 %v471, %v459
    %v477 = vmul.f32 %v471, %v460
    %v478 = vmul.f32 %v471, %v461
    %v479 = vmul.f32 %v471, %v462
    %v480 = vmul.f32 %v471, %v463
    %v481 = vmul.f32 %v471, %v464
    %v482 = vmul.f32 %v471, %v465
    %v483 = vmul.f32 %v471, %v466
    %v484 = vmul.f32 %v471, %v467
    %v485 = vmul.f32 %v471, %v468
    %v486 = vmul.f32 %v471, %v469
    %v487 = vmul.f32 %v471, %v470
    %v488 = vadd.f32 %v391, %v472
    %v489 = vadd.f32 %v392, %v473
    %v490 = vadd.f32 %v393, %v474
    %v491 = vadd.f32 %v394, %v475
    %v492 = vadd.f32 %v395, %v476
    %v493 = vadd.f32 %v396, %v477
    %v494 = vadd.f32 %v397, %v478
    %v495 = vadd.f32 %v398, %v479
    %v496 = vadd.f32 %v399, %v480
    %v497 = vadd.f32 %v400, %v481
    %v498 = vadd.f32 %v401, %v482
    %v499 = vadd.f32 %v402, %v483
    %v500 = vadd.f32 %v403, %v484
    %v501 = vadd.f32 %v404, %v485
    %v502 = vadd.f32 %v405, %v486
    %v503 = vadd.f32 %v406, %v487
    %vm504 = vcmask 523264
    %v506 = vsel %vm504, %v315, 0
    %508 = vmatprep.subr.mxu0 %v489
    %509 = vmatpush1.msra.mxu0 %v488
    %510 = vmatprep.subr.mxu0 %v491
    %511 = vmatpush1.msra.mxu0 %v490
    %512 = vmatprep.subr.mxu0 %v493
    %513 = vmatpush1.msra.mxu0 %v492
    %514 = vmatprep.subr.mxu0 %v495
    %515 = vmatpush1.msra.mxu0 %v494
    %516 = vmatprep.subr.mxu0 %v497
    %517 = vmatpush1.msra.mxu0 %v496
    %518 = vmatprep.subr.mxu0 %v499
    %519 = vmatpush1.msra.mxu0 %v498
    %520 = vmatprep.subr.mxu0 %v501
    %521 = vmatpush1.msra.mxu0 %v500
    %522 = vmatprep.subr.mxu0 %v503
    %523 = vmatpush1.msra.mxu0 %v502
    %524 = vmatprep.subr.mxu0 0.0
    %525 = vmatpush1.msra.mxu0 0.0
    %526 = vmatprep.subr.mxu0 0.0
    %527 = vmatpush1.msra.mxu0 0.0
    %528 = vmatprep.subr.mxu0 0.0
    %529 = vmatpush1.msra.mxu0 0.0
    %530 = vmatprep.subr.mxu0 0.0
    %531 = vmatpush1.msra.mxu0 0.0
    %532 = vmatprep.subr.mxu0 0.0
    %533 = vmatpush1.msra.mxu0 0.0
    %534 = vmatprep.subr.mxu0 0.0
    %535 = vmatpush1.msra.mxu0 0.0
    %536 = vmatprep.subr.mxu0 0.0
    %537 = vmatpush1.msra.mxu0 0.0
    %538 = vmatprep.subr.mxu0 0.0
    %539 = vmatpush1.msra.mxu0 0.0
    %540 = vmatprep.subr.mxu0 0.0
    %541 = vmatpush1.msra.mxu0 0.0
    %542 = vmatprep.subr.mxu0 0.0
    %543 = vmatpush1.msra.mxu0 0.0
    %544 = vmatprep.subr.mxu0 0.0
    %545 = vmatpush1.msra.mxu0 0.0
    %546 = vmatprep.subr.mxu0 0.0
    %547 = vmatpush1.msra.mxu0 0.0
    %548 = vmatprep.subr.mxu0 0.0
    %549 = vmatpush1.msra.mxu0 0.0
    %550 = vmatprep.subr.mxu0 0.0
    %551 = vmatpush1.msra.mxu0 0.0
    %552 = vmatprep.subr.mxu0 0.0
    %553 = vmatpush1.msra.mxu0 0.0
    %554 = vmatprep.subr.mxu0 0.0
    %555 = vmatpush1.msra.mxu0 0.0
    %556 = vmatprep.subr.mxu0 0.0
    %557 = vmatpush1.msra.mxu0 0.0
    %558 = vmatprep.subr.mxu0 0.0
    %559 = vmatpush1.msra.mxu0 0.0
    %560 = vmatprep.subr.mxu0 0.0
    %561 = vmatpush1.msra.mxu0 0.0
    %562 = vmatprep.subr.mxu0 0.0
    %563 = vmatpush1.msra.mxu0 0.0
    %564 = vmatprep.subr.mxu0 0.0
    %565 = vmatpush1.msra.mxu0 0.0
    %566 = vmatprep.subr.mxu0 0.0
    %567 = vmatpush1.msra.mxu0 0.0
    %568 = vmatprep.subr.mxu0 0.0
    %569 = vmatpush1.msra.mxu0 0.0
    %570 = vmatprep.subr.mxu0 0.0
    %571 = vmatpush1.msra.mxu0 0.0
    %572 = vmatprep.mubr.f32.mxu0 0.0
    %573 = vmatmul.mubr.f32.gmra.mrb[0].mxu0 %v506
    %v574 = vpop.f32.mrb[0].mxu0
    %v575 = vadd.f32 0.0, %v574
    %v576 = vpop.f32.mrb[0].mxu0
    %v577 = vadd.f32 0.0, %v576
    %578 = vdwg.mxu0
    %s579 = sld [smem:[#allocation2 + $0x1]]
    %s580 = sld [smem:[#allocation2 + $0x3]]
    %v581 = vstv %s579
    %v582 = vmul.f32 %v581, %v33
    %v583 = vstv %s580
    %v584 = vmul.f32 %v583, %v575
    %v585 = vmul.f32 %v583, %v577
    %v588 = vcombine.low %v584, %v585
    %v590 = vadd.f32 %v582, %v588
    %591 = vst [vmem:[%s5] sm:$0xff] %v590
    %592 = vset.pattern.permute.xlu0 1
    %593 = vperm.xlu0 %592, %v307
    %v594 = vpop.permute.xlu0 %593
    %596 = vset.pattern.permute.xlu0 1
    %597 = vperm.xlu0 %596, %v308
    %v598 = vpop.permute.xlu0 %597
    %600 = vset.pattern.permute.xlu0 1
    %601 = vperm.xlu0 %600, %v309
    %v602 = vpop.permute.xlu0 %601
    %604 = vset.pattern.permute.xlu0 1
    %605 = vperm.xlu0 %604, %v310
    %v606 = vpop.permute.xlu0 %605
    %608 = vset.pattern.permute.xlu0 1
    %609 = vperm.xlu0 %608, %v311
    %v610 = vpop.permute.xlu0 %609
    %612 = vset.pattern.permute.xlu0 1
    %613 = vperm.xlu0 %612, %v312
    %v614 = vpop.permute.xlu0 %613
    %616 = vset.pattern.permute.xlu0 1
    %617 = vperm.xlu0 %616, %v313
    %v618 = vpop.permute.xlu0 %617
    %620 = vset.pattern.permute.xlu0 1
    %621 = vperm.xlu0 %620, %v314
    %v622 = vpop.permute.xlu0 %621
    %v624 = vadd.f32 %v261, %v594
    %v625 = vadd.f32 %v263, %v594
    %v626 = vadd.f32 %v267, %v598
    %v627 = vadd.f32 %v269, %v598
    %v628 = vadd.f32 %v273, %v602
    %v629 = vadd.f32 %v275, %v602
    %v630 = vadd.f32 %v279, %v606
    %v631 = vadd.f32 %v281, %v606
    %v632 = vadd.f32 %v285, %v610
    %v633 = vadd.f32 %v287, %v610
    %v634 = vadd.f32 %v291, %v614
    %v635 = vadd.f32 %v293, %v614
    %v636 = vadd.f32 %v297, %v618
    %v637 = vadd.f32 %v299, %v618
    %v638 = vadd.f32 %v303, %v622
    %v639 = vadd.f32 %v305, %v622
    %v640 = vtanh.pop %v624
    %v641 = vtanh.pop %v625
    %v642 = vtanh.pop %v626
    %v643 = vtanh.pop %v627
    %v644 = vtanh.pop %v628
    %v645 = vtanh.pop %v629
    %v646 = vtanh.pop %v630
    %v647 = vtanh.pop %v631
    %v648 = vtanh.pop %v632
    %v649 = vtanh.pop %v633
    %v650 = vtanh.pop %v634
    %v651 = vtanh.pop %v635
    %v652 = vtanh.pop %v636
    %v653 = vtanh.pop %v637
    %v654 = vtanh.pop %v638
    %v655 = vtanh.pop %v639
    %v656 = vmul.f32 %v390, %v640
    %v657 = vmul.f32 %v390, %v641
    %v658 = vmul.f32 %v390, %v642
    %v659 = vmul.f32 %v390, %v643
    %v660 = vmul.f32 %v390, %v644
    %v661 = vmul.f32 %v390, %v645
    %v662 = vmul.f32 %v390, %v646
    %v663 = vmul.f32 %v390, %v647
    %v664 = vmul.f32 %v390, %v648
    %v665 = vmul.f32 %v390, %v649
    %v666 = vmul.f32 %v390, %v650
    %v667 = vmul.f32 %v390, %v651
    %v668 = vmul.f32 %v390, %v652
    %v669 = vmul.f32 %v390, %v653
    %v670 = vmul.f32 %v390, %v654
    %v671 = vmul.f32 %v390, %v655
    %672 = vset.pattern.permute.xlu0 3
    %673 = vperm.xlu0 %672, %v307
    %v674 = vpop.permute.xlu0 %673
    %676 = vset.pattern.permute.xlu0 3
    %677 = vperm.xlu0 %676, %v308
    %v678 = vpop.permute.xlu0 %677
    %680 = vset.pattern.permute.xlu0 3
    %681 = vperm.xlu0 %680, %v309
    %v682 = vpop.permute.xlu0 %681
    %684 = vset.pattern.permute.xlu0 3
    %685 = vperm.xlu0 %684, %v310
    %v686 = vpop.permute.xlu0 %685
    %688 = vset.pattern.permute.xlu0 3
    %689 = vperm.xlu0 %688, %v311
    %v690 = vpop.permute.xlu0 %689
    %692 = vset.pattern.permute.xlu0 3
    %693 = vperm.xlu0 %692, %v312
    %v694 = vpop.permute.xlu0 %693
    %696 = vset.pattern.permute.xlu0 3
    %697 = vperm.xlu0 %696, %v313
    %v698 = vpop.permute.xlu0 %697
    %700 = vset.pattern.permute.xlu0 3
    %701 = vperm.xlu0 %700, %v314
    %v702 = vpop.permute.xlu0 %701
    %v704 = vadd.f32 %v261, %v674
    %v705 = vadd.f32 %v263, %v674
    %v706 = vadd.f32 %v267, %v678
    %v707 = vadd.f32 %v269, %v678
    %v708 = vadd.f32 %v273, %v682
    %v709 = vadd.f32 %v275, %v682
    %v710 = vadd.f32 %v279, %v686
    %v711 = vadd.f32 %v281, %v686
    %v712 = vadd.f32 %v285, %v690
    %v713 = vadd.f32 %v287, %v690
    %v714 = vadd.f32 %v291, %v694
    %v715 = vadd.f32 %v293, %v694
    %v716 = vadd.f32 %v297, %v698
    %v717 = vadd.f32 %v299, %v698
    %v718 = vadd.f32 %v303, %v702
    %v719 = vadd.f32 %v305, %v702
    %v720 = vtanh.pop %v704
    %v721 = vtanh.pop %v705
    %v722 = vtanh.pop %v706
    %v723 = vtanh.pop %v707
    %v724 = vtanh.pop %v708
    %v725 = vtanh.pop %v709
    %v726 = vtanh.pop %v710
    %v727 = vtanh.pop %v711
    %v728 = vtanh.pop %v712
    %v729 = vtanh.pop %v713
    %v730 = vtanh.pop %v714
    %v731 = vtanh.pop %v715
    %v732 = vtanh.pop %v716
    %v733 = vtanh.pop %v717
    %v734 = vtanh.pop %v718
    %v735 = vtanh.pop %v719
    %v736 = vmul.f32 %v471, %v720
    %v737 = vmul.f32 %v471, %v721
    %v738 = vmul.f32 %v471, %v722
    %v739 = vmul.f32 %v471, %v723
    %v740 = vmul.f32 %v471, %v724
    %v741 = vmul.f32 %v471, %v725
    %v742 = vmul.f32 %v471, %v726
    %v743 = vmul.f32 %v471, %v727
    %v744 = vmul.f32 %v471, %v728
    %v745 = vmul.f32 %v471, %v729
    %v746 = vmul.f32 %v471, %v730
    %v747 = vmul.f32 %v471, %v731
    %v748 = vmul.f32 %v471, %v732
    %v749 = vmul.f32 %v471, %v733
    %v750 = vmul.f32 %v471, %v734
    %v751 = vmul.f32 %v471, %v735
    %v752 = vadd.f32 %v656, %v736
    %v753 = vadd.f32 %v657, %v737
    %v754 = vadd.f32 %v658, %v738
    %v755 = vadd.f32 %v659, %v739
    %v756 = vadd.f32 %v660, %v740
    %v757 = vadd.f32 %v661, %v741
    %v758 = vadd.f32 %v662, %v742
    %v759 = vadd.f32 %v663, %v743
    %v760 = vadd.f32 %v664, %v744
    %v761 = vadd.f32 %v665, %v745
    %v762 = vadd.f32 %v666, %v746
    %v763 = vadd.f32 %v667, %v747
    %v764 = vadd.f32 %v668, %v748
    %v765 = vadd.f32 %v669, %v749
    %v766 = vadd.f32 %v670, %v750
    %v767 = vadd.f32 %v671, %v751
    %768 = vmatprep.subr.mxu0 %v753
    %769 = vmatpush1.msra.mxu0 %v752
    %770 = vmatprep.subr.mxu0 %v755
    %771 = vmatpush1.msra.mxu0 %v754
    %772 = vmatprep.subr.mxu0 %v757
    %773 = vmatpush1.msra.mxu0 %v756
    %774 = vmatprep.subr.mxu0 %v759
    %775 = vmatpush1.msra.mxu0 %v758
    %776 = vmatprep.subr.mxu0 %v761
    %777 = vmatpush1.msra.mxu0 %v760
    %778 = vmatprep.subr.mxu0 %v763
    %779 = vmatpush1.msra.mxu0 %v762
    %780 = vmatprep.subr.mxu0 %v765
    %781 = vmatpush1.msra.mxu0 %v764
    %782 = vmatprep.subr.mxu0 %v767
    %783 = vmatpush1.msra.mxu0 %v766
    %784 = vmatprep.subr.mxu0 0.0
    %785 = vmatpush1.msra.mxu0 0.0
    %786 = vmatprep.subr.mxu0 0.0
    %787 = vmatpush1.msra.mxu0 0.0
    %788 = vmatprep.subr.mxu0 0.0
    %789 = vmatpush1.msra.mxu0 0.0
    %790 = vmatprep.subr.mxu0 0.0
    %791 = vmatpush1.msra.mxu0 0.0
    %792 = vmatprep.subr.mxu0 0.0
    %793 = vmatpush1.msra.mxu0 0.0
    %794 = vmatprep.subr.mxu0 0.0
    %795 = vmatpush1.msra.mxu0 0.0
    %796 = vmatprep.subr.mxu0 0.0
    %797 = vmatpush1.msra.mxu0 0.0
    %798 = vmatprep.subr.mxu0 0.0
    %799 = vmatpush1.msra.mxu0 0.0
    %800 = vmatprep.subr.mxu0 0.0
    %801 = vmatpush1.msra.mxu0 0.0
    %802 = vmatprep.subr.mxu0 0.0
    %803 = vmatpush1.msra.mxu0 0.0
    %804 = vmatprep.subr.mxu0 0.0
    %805 = vmatpush1.msra.mxu0 0.0
    %806 = vmatprep.subr.mxu0 0.0
    %807 = vmatpush1.msra.mxu0 0.0
    %808 = vmatprep.subr.mxu0 0.0
    %809 = vmatpush1.msra.mxu0 0.0
    %810 = vmatprep.subr.mxu0 0.0
    %811 = vmatpush1.msra.mxu0 0.0
    %812 = vmatprep.subr.mxu0 0.0
    %813 = vmatpush1.msra.mxu0 0.0
    %814 = vmatprep.subr.mxu0 0.0
    %815 = vmatpush1.msra.mxu0 0.0
    %816 = vmatprep.subr.mxu0 0.0
    %817 = vmatpush1.msra.mxu0 0.0
    %818 = vmatprep.subr.mxu0 0.0
    %819 = vmatpush1.msra.mxu0 0.0
    %820 = vmatprep.subr.mxu0 0.0
    %821 = vmatpush1.msra.mxu0 0.0
    %822 = vmatprep.subr.mxu0 0.0
    %823 = vmatpush1.msra.mxu0 0.0
    %824 = vmatprep.subr.mxu0 0.0
    %825 = vmatpush1.msra.mxu0 0.0
    %826 = vmatprep.subr.mxu0 0.0
    %827 = vmatpush1.msra.mxu0 0.0
    %828 = vmatprep.subr.mxu0 0.0
    %829 = vmatpush1.msra.mxu0 0.0
    %830 = vmatprep.subr.mxu0 0.0
    %831 = vmatpush1.msra.mxu0 0.0
    %832 = vmatprep.mubr.f32.mxu0 0.0
    %833 = vmatmul.mubr.f32.gmra.mrb[0].mxu0 %v506
    %v834 = vpop.f32.mrb[0].mxu0
    %v835 = vadd.f32 0.0, %v834
    %v836 = vpop.f32.mrb[0].mxu0
    %v837 = vadd.f32 0.0, %v836
    %838 = vdwg.mxu0
    %s839 = sld [smem:[#allocation2 + $0x2]]
    %s840 = sld [smem:[#allocation2 + $0x4]]
    %v841 = vstv %s839
    %v842 = vmul.f32 %v841, %v34
    %v843 = vstv %s840
    %v844 = vmul.f32 %v843, %v835
    %v845 = vmul.f32 %v843, %v837
    %v848 = vcombine.low %v844, %v845
    %v850 = vadd.f32 %v842, %v848
    %851 = vst [vmem:[%s5 + $0x8] sm:$0xff] %v850
    // Predicated region
    $region26: #{cfg_denoiser_forward.1} parent=1 // pred_check
      _
    $region27: #{cfg_denoiser_forward.1} parent=1 // pred_check_branch
      %853 = sbr.rel (0) target = $region29
    $region28: #{cfg_denoiser_forward.1} parent=1 // pred_region
      _
    $region29: #{cfg_denoiser_forward.1} parent=1 // pred_fallthru
      _
    // Predicated region
    $region30: #{cfg_denoiser_forward.1} parent=1 // pred_check
      _
    $region31: #{cfg_denoiser_forward.1} parent=1 // pred_check_branch
      %855 = sbr.rel (0) target = $region33
    $region32: #{cfg_denoiser_forward.1} parent=1 // pred_region
      _
    $region33: #{cfg_denoiser_forward.1} parent=1 // pred_fallthru
      _
    %856 = vsyncpa [#allocation3], 1

</llo_original>
